<compile_context>
chip_gen: v5e
topology: v5e:2x2
jax: 0.10.0
libtpu: 0.0.40
codegen_flags: <defaults>
</compile_context>

<pallas_src>
import functools

import jax
import jax.numpy as jnp
from jax.experimental import pallas as pl
from jax.experimental.pallas import tpu as pltpu


def _round_up(x, m):
    return ((x + m - 1) // m) * m


def cab_kernel(x1_ref, x2_ref, w1a_ref, w1b_ref, b1_ref, w2_ref, b2_ref,
               out_ref, *, inv_hw):
    # Blocks: x1/x2/out (NB, Cp, HWp); weights (Cp, Cp); biases (1, Cp).
    x1 = x1_ref[...]
    x2 = x2_ref[...]

    # Global average pool per channel.  Spatial zero-padding does not affect
    # the sum; divide by the true H*W (baked in as a constant).
    p1 = jnp.sum(x1, axis=-1) * inv_hw          # (NB, Cp)
    p2 = jnp.sum(x2, axis=-1) * inv_hw          # (NB, Cp)

    # Squeeze-excitation as batched matmuls over the NB images in this block.
    # w1 was split over the concat halves on the host, so the pooled vectors
    # never need a sublane-axis concatenate.
    z = (jnp.dot(p1, w1a_ref[...], preferred_element_type=jnp.float32)
         + jnp.dot(p2, w1b_ref[...], preferred_element_type=jnp.float32)
         + b1_ref[...])                          # (NB, Cp)
    z = jnp.maximum(z, 0.0)                      # ReLU
    s = jax.nn.sigmoid(
        jnp.dot(z, w2_ref[...], preferred_element_type=jnp.float32)
        + b2_ref[...])                           # (NB, Cp)

    # Epilogue: per-channel scale of x2 + residual x1.  One mul-add per vreg,
    # lane-dense store.
    out_ref[...] = s[:, :, None] * x2 + x1


def cab_forward(x1, x2, w1, b1, w2, b2):
    """x1, x2: (N, C, H, W) f32. w1: (C, 2C), w2: (C, C), b1/b2: (C, 1)."""
    N, C, H, W = x1.shape
    HW = H * W
    Cp = _round_up(C, 8)        # f32 sublane tile
    HWp = _round_up(HW, 128)    # lane tile -> unmasked stores

    # Pick NB (images per grid step): amortize step overhead, keep
    # 2 inputs + 1 output, double-buffered (~6x block) well under the VMEM
    # budget, and keep >= 2 grid steps when N >= 2 (v7x megacore).
    img_bytes = Cp * HWp * 4
    vmem_cap_per_tensor = 2 * 1024 * 1024
    nb_vmem = max(1, vmem_cap_per_tensor // img_bytes)
    nb = max(1, min(16, nb_vmem, pl.cdiv(N, 2)))
    Np = _round_up(N, nb)

    def prep(x):
        xf = x.reshape(N, C, HW)
        return jnp.pad(xf, ((0, Np - N), (0, Cp - C), (0, HWp - HW)))

    x1f = prep(x1)
    x2f = prep(x2)

    # 1x1 convs == matmuls over channels.  Split w1 into the columns that see
    # x1's pooled channels vs x2's (matching torch.cat([x1, x2], dim=1)),
    # pre-transpose for (NB, Cp) @ (Cp, Cp), zero-pad to (Cp, Cp).
    pc = Cp - C
    w1a_t = jnp.pad(w1[:, :C].T, ((0, pc), (0, pc)))
    w1b_t = jnp.pad(w1[:, C:].T, ((0, pc), (0, pc)))
    w2_t = jnp.pad(w2.T, ((0, pc), (0, pc)))
    b1r = jnp.pad(b1.reshape(1, C), ((0, 0), (0, pc)))
    b2r = jnp.pad(b2.reshape(1, C), ((0, 0), (0, pc)))

    # Alias x1f with the output only when padding guarantees x1f is a fresh
    # intermediate buffer (never clobber the caller's x1).
    padded = (Np != N) or (Cp != C) or (HWp != HW)
    io_alias = {0: 0} if padded else {}

    kernel = functools.partial(cab_kernel, inv_hw=1.0 / HW)

    out = pl.pallas_call(
        kernel,
        out_shape=jax.ShapeDtypeStruct((Np, Cp, HWp), jnp.float32),
        grid_spec=pltpu.PrefetchScalarGridSpec(
            num_scalar_prefetch=0,
            grid=(Np // nb,),
            in_specs=[
                pl.BlockSpec((nb, Cp, HWp), lambda n: (n, 0, 0)),
                pl.BlockSpec((nb, Cp, HWp), lambda n: (n, 0, 0)),
                pl.BlockSpec((Cp, Cp), lambda n: (0, 0)),
                pl.BlockSpec((Cp, Cp), lambda n: (0, 0)),
                pl.BlockSpec((1, Cp), lambda n: (0, 0)),
                pl.BlockSpec((Cp, Cp), lambda n: (0, 0)),
                pl.BlockSpec((1, Cp), lambda n: (0, 0)),
            ],
            out_specs=pl.BlockSpec((nb, Cp, HWp), lambda n: (n, 0, 0)),
        ),
        compiler_params=pltpu.CompilerParams(
            dimension_semantics=("parallel",),
            vmem_limit_bytes=32 * 1024 * 1024,
        ),
        input_output_aliases=io_alias,
    )(x1f, x2f, w1a_t, w1b_t, b1r, w2_t, b2r)

    return out[:N, :C, :HW].reshape(N, C, H, W)


def cab_reference(x1, x2, w1, b1, w2, b2):
    """Pure-JAX reference matching the PyTorch forward."""
    x = jnp.concatenate([x1, x2], axis=1)                # (N, 2C, H, W)
    p = jnp.mean(x, axis=(2, 3))                         # (N, 2C)
    z = jnp.maximum(p @ w1.T + b1[:, 0], 0.0)            # (N, C)
    s = jax.nn.sigmoid(z @ w2.T + b2[:, 0])              # (N, C)
    s = s[:, :, None, None]
    return s * x2 + x1


if __name__ == "__main__":
    key = jax.random.PRNGKey(0)
    N, C, H, W = 2, 4, 16, 16          # in_channels = 2C, out_channels = C
    Cin, Cout = 2 * C, C

    k1, k2, k3, k4, k5, k6 = jax.random.split(key, 6)
    x1 = jax.random.normal(k1, (N, C, H, W), dtype=jnp.float32)
    x2 = jax.random.normal(k2, (N, C, H, W), dtype=jnp.float32)

    # 1x1 conv weights squeezed to matrices, biases as columns.
    w1 = jax.random.normal(k3, (Cout, Cin), dtype=jnp.float32) * 0.2
    b1 = jax.random.normal(k4, (Cout, 1), dtype=jnp.float32) * 0.1
    w2 = jax.random.normal(k5, (Cout, Cout), dtype=jnp.float32) * 0.2
    b2 = jax.random.normal(k6, (Cout, 1), dtype=jnp.float32) * 0.1

    out = cab_forward(x1, x2, w1, b1, w2, b2)
    out = jax.block_until_ready(out)

    ref = cab_reference(x1, x2, w1, b1, w2, b2)
    assert out.shape == (N, C, H, W)
    assert jnp.allclose(out, ref, atol=1e-5, rtol=1e-5), "mismatch vs reference"

    print("KERNEL_OK")
</pallas_src>

<mosaic_0001>
module attributes {stable_mosaic.version = 11 : i64} {
  func.func @cab_kernel(%arg0: i32, %arg1: memref<1x8x256xf32, #tpu.memory_space<vmem>>, %arg2: memref<1x8x256xf32, #tpu.memory_space<vmem>>, %arg3: memref<8x8xf32, #tpu.memory_space<vmem>>, %arg4: memref<8x8xf32, #tpu.memory_space<vmem>>, %arg5: memref<1x8xf32, #tpu.memory_space<vmem>>, %arg6: memref<8x8xf32, #tpu.memory_space<vmem>>, %arg7: memref<1x8xf32, #tpu.memory_space<vmem>>, %arg8: memref<1x8x256xf32, #tpu.memory_space<vmem>>) attributes {dimension_semantics = [#tpu.dimension_semantics<parallel>], iteration_bounds = array<i64: 2>, scalar_prefetch = 0 : i64, scratch_operands = 0 : i64, tpu.core_type = #tpu.core_type<tc>, window_params = [{transform_indices = @transform_0, window_bounds = array<i64: 1, 8, 256>}, {transform_indices = @transform_1, window_bounds = array<i64: 1, 8, 256>}, {pipeline_mode = #tpu.pipeline_mode<synchronous>, transform_indices = @transform_2, window_bounds = array<i64: 8, 8>}, {pipeline_mode = #tpu.pipeline_mode<synchronous>, transform_indices = @transform_3, window_bounds = array<i64: 8, 8>}, {pipeline_mode = #tpu.pipeline_mode<synchronous>, transform_indices = @transform_4, window_bounds = array<i64: 1, 8>}, {pipeline_mode = #tpu.pipeline_mode<synchronous>, transform_indices = @transform_5, window_bounds = array<i64: 8, 8>}, {pipeline_mode = #tpu.pipeline_mode<synchronous>, transform_indices = @transform_6, window_bounds = array<i64: 1, 8>}, {transform_indices = @transform_7, window_bounds = array<i64: 1, 8, 256>}]} {
    %c0 = arith.constant 0 : index
    %c0_0 = arith.constant 0 : index
    %c0_1 = arith.constant 0 : index
    %0 = vector.load %arg1[%c0, %c0_0, %c0_1] : memref<1x8x256xf32, #tpu.memory_space<vmem>>, vector<1x8x256xf32>
    %c0_2 = arith.constant 0 : index
    %c0_3 = arith.constant 0 : index
    %c0_4 = arith.constant 0 : index
    %1 = vector.load %arg2[%c0_2, %c0_3, %c0_4] : memref<1x8x256xf32, #tpu.memory_space<vmem>>, vector<1x8x256xf32>
    %cst = arith.constant dense<0.000000e+00> : vector<1x8xf32>
    %2 = vector.multi_reduction <add>, %0, %cst [2] : vector<1x8x256xf32> to vector<1x8xf32>
    %cst_5 = arith.constant 3.906250e-03 : f32
    %3 = vector.broadcast %cst_5 : f32 to vector<1x8xf32>
    %4 = arith.mulf %2, %3 : vector<1x8xf32>
    %cst_6 = arith.constant dense<0.000000e+00> : vector<1x8xf32>
    %5 = vector.multi_reduction <add>, %1, %cst_6 [2] : vector<1x8x256xf32> to vector<1x8xf32>
    %cst_7 = arith.constant 3.906250e-03 : f32
    %6 = vector.broadcast %cst_7 : f32 to vector<1x8xf32>
    %7 = arith.mulf %5, %6 : vector<1x8xf32>
    %c0_8 = arith.constant 0 : index
    %c0_9 = arith.constant 0 : index
    %8 = vector.load %arg3[%c0_8, %c0_9] : memref<8x8xf32, #tpu.memory_space<vmem>>, vector<8x8xf32>
    %cst_10 = arith.constant dense<0.000000e+00> : vector<1x8xf32>
    %9 = tpu.matmul %4, %8, %cst_10 {dimension_numbers = #tpu.dot_dimension_numbers<[1], [0], [0], [1], [0, 0, 1, 1], [], []>} : vector<1x8xf32>, vector<8x8xf32>, vector<1x8xf32> -> vector<1x8xf32>
    %c0_11 = arith.constant 0 : index
    %c0_12 = arith.constant 0 : index
    %10 = vector.load %arg4[%c0_11, %c0_12] : memref<8x8xf32, #tpu.memory_space<vmem>>, vector<8x8xf32>
    %cst_13 = arith.constant dense<0.000000e+00> : vector<1x8xf32>
    %11 = tpu.matmul %7, %10, %cst_13 {dimension_numbers = #tpu.dot_dimension_numbers<[1], [0], [0], [1], [0, 0, 1, 1], [], []>} : vector<1x8xf32>, vector<8x8xf32>, vector<1x8xf32> -> vector<1x8xf32>
    %12 = arith.addf %9, %11 : vector<1x8xf32>
    %c0_14 = arith.constant 0 : index
    %c0_15 = arith.constant 0 : index
    %13 = vector.load %arg5[%c0_14, %c0_15] : memref<1x8xf32, #tpu.memory_space<vmem>>, vector<1x8xf32>
    %14 = arith.addf %12, %13 : vector<1x8xf32>
    %cst_16 = arith.constant 0.000000e+00 : f32
    %15 = vector.broadcast %cst_16 : f32 to vector<1x8xf32>
    %16 = arith.maximumf %14, %15 : vector<1x8xf32>
    %c0_17 = arith.constant 0 : index
    %c0_18 = arith.constant 0 : index
    %17 = vector.load %arg6[%c0_17, %c0_18] : memref<8x8xf32, #tpu.memory_space<vmem>>, vector<8x8xf32>
    %cst_19 = arith.constant dense<0.000000e+00> : vector<1x8xf32>
    %18 = tpu.matmul %16, %17, %cst_19 {dimension_numbers = #tpu.dot_dimension_numbers<[1], [0], [0], [1], [0, 0, 1, 1], [], []>} : vector<1x8xf32>, vector<8x8xf32>, vector<1x8xf32> -> vector<1x8xf32>
    %c0_20 = arith.constant 0 : index
    %c0_21 = arith.constant 0 : index
    %19 = vector.load %arg7[%c0_20, %c0_21] : memref<1x8xf32, #tpu.memory_space<vmem>>, vector<1x8xf32>
    %20 = arith.addf %18, %19 : vector<1x8xf32>
    %21 = arith.negf %20 : vector<1x8xf32>
    %22 = math.exp %21 : vector<1x8xf32>
    %cst_22 = arith.constant 1.000000e+00 : f32
    %23 = vector.broadcast %cst_22 : f32 to vector<1x8xf32>
    %24 = arith.addf %23, %22 : vector<1x8xf32>
    %25 = arith.divf %23, %24 : vector<1x8xf32>
    %26 = vector.shape_cast %25 : vector<1x8xf32> to vector<1x8x1xf32>
    %27 = vector.broadcast %26 : vector<1x8x1xf32> to vector<1x8x256xf32>
    %28 = arith.mulf %27, %1 : vector<1x8x256xf32>
    %29 = arith.addf %28, %0 : vector<1x8x256xf32>
    %c0_23 = arith.constant 0 : index
    %c0_24 = arith.constant 0 : index
    %c0_25 = arith.constant 0 : index
    %30 = vector.load %arg8[%c0_23, %c0_24, %c0_25] : memref<1x8x256xf32, #tpu.memory_space<vmem>>, vector<1x8x256xf32>
    tpu.vector_store %arg8[%c0_23, %c0_24, %c0_25], %29 {strides = array<i32>} : memref<1x8x256xf32, #tpu.memory_space<vmem>>, vector<1x8x256xf32>,
    return
  }
  func.func @transform_0(%arg0: i32) -> (i32, i32, i32) {
    %c0_i32 = arith.constant 0 : i32
    %c0_i32_0 = arith.constant 0 : i32
    %c0_i32_1 = arith.constant 0 : i32
    return %arg0, %c0_i32, %c0_i32_0 : i32, i32, i32
  }
  func.func @transform_1(%arg0: i32) -> (i32, i32, i32) {
    %c0_i32 = arith.constant 0 : i32
    %c0_i32_0 = arith.constant 0 : i32
    %c0_i32_1 = arith.constant 0 : i32
    return %arg0, %c0_i32, %c0_i32_0 : i32, i32, i32
  }
  func.func @transform_2(%arg0: i32) -> (i32, i32) {
    %c0_i32 = arith.constant 0 : i32
    %c0_i32_0 = arith.constant 0 : i32
    %c0_i32_1 = arith.constant 0 : i32
    return %c0_i32, %c0_i32_0 : i32, i32
  }
  func.func @transform_3(%arg0: i32) -> (i32, i32) {
    %c0_i32 = arith.constant 0 : i32
    %c0_i32_0 = arith.constant 0 : i32
    %c0_i32_1 = arith.constant 0 : i32
    return %c0_i32, %c0_i32_0 : i32, i32
  }
  func.func @transform_4(%arg0: i32) -> (i32, i32) {
    %c0_i32 = arith.constant 0 : i32
    %c0_i32_0 = arith.constant 0 : i32
    %c0_i32_1 = arith.constant 0 : i32
    return %c0_i32, %c0_i32_0 : i32, i32
  }
  func.func @transform_5(%arg0: i32) -> (i32, i32) {
    %c0_i32 = arith.constant 0 : i32
    %c0_i32_0 = arith.constant 0 : i32
    %c0_i32_1 = arith.constant 0 : i32
    return %c0_i32, %c0_i32_0 : i32, i32
  }
  func.func @transform_6(%arg0: i32) -> (i32, i32) {
    %c0_i32 = arith.constant 0 : i32
    %c0_i32_0 = arith.constant 0 : i32
    %c0_i32_1 = arith.constant 0 : i32
    return %c0_i32, %c0_i32_0 : i32, i32
  }
  func.func @transform_7(%arg0: i32) -> (i32, i32, i32) {
    %c0_i32 = arith.constant 0 : i32
    %c0_i32_0 = arith.constant 0 : i32
    %c0_i32_1 = arith.constant 0 : i32
    return %arg0, %c0_i32, %c0_i32_0 : i32, i32, i32
  }
}

</mosaic_0001>

<llo_original>
// kernel: tpu_custom_call.1
$region0: #{tpu_custom_call.1}
  #allocation0 [shape = 'u32[]', space=smem, size = 0x4, offset = 0x4, fixed_abs, tag = 'smem constant byte address 0x4 - core index']
  #allocation1 [shape = 'u32[72,128]{1,0:T(1,128)}', space=vmem, size = 0x9000, scoped, tag = 'internal scratch']
  %s0 = inlined_call_operand.hbm [shape: f32[2,8,256], index: 0, kind: input, shape index: {}, may-alias: {0,7}]
  %s1 = inlined_call_operand.vmem [shape: f32[2,8,256], index: 1, kind: input, shape index: {}]
  %s2 = inlined_call_operand.vmem [shape: f32[8,8], index: 2, kind: input, shape index: {}]
  %s3 = inlined_call_operand.vmem [shape: f32[8,8], index: 3, kind: input, shape index: {}]
  %s4 = inlined_call_operand.vmem [shape: f32[1,8], index: 4, kind: input, shape index: {}]
  %s5 = inlined_call_operand.vmem [shape: f32[8,8], index: 5, kind: input, shape index: {}]
  %s6 = inlined_call_operand.vmem [shape: f32[1,8], index: 6, kind: input, shape index: {}]
  %s7 = inlined_call_operand.hbm [shape: f32[2,8,256], index: 7, kind: output, shape index: {}, may-alias: {0,7}]
  %s8 = sld [smem:[#allocation0]]
  $region65: #{tpu_custom_call.1} parent=0
    _
  %s10 = ssub.s32 1, %s8
  %s11 = scalar_select 0, %s10, %s8
  $region1: #{tpu_custom_call.1} parent=0
    #allocation2 [shape = 'u8[16384]{0}', space=vmem, size = 0x4000, scoped, tag = 'input window, operand 0']
    #allocation3 [shape = 's32[2]{0}', space=sflag, size = 0x8, scoped, tag = 'scoped memory for tpu_custom_call.1']
    #allocation4 [shape = 's32[2]{0}', space=sflag, size = 0x8, scoped, tag = 'scoped memory for tpu_custom_call.1']
    #allocation5 [shape = 'u8[16384]{0}', space=vmem, size = 0x4000, scoped, tag = 'output window, operand 0']
    %12 = vsyncpa [#allocation3], 0
    %s13 = scalar_lea.sflag [#allocation3], 1
    %14 = vsyncpa %s13, 0
    %15 = vsyncpa [#allocation4], 0
    %s16 = scalar_lea.sflag [#allocation4], 1
    %17 = vsyncpa %s16, 0
    loop: start=0, step=1, limit=4
    $region2: #{tpu_custom_call.1} parent=1 // loop_pre_header
      _
    $region3: #{tpu_custom_call.1} parent=1 // loop_header
      %s19 = sphi 0, %s23
      %p20 = scmp.ge.s32.totalorder %s19, 4
      %s29 = sphi 0, %s31
      %s32 = sphi 0, %s29
      %s33 = sphi 0, %s32
      %s49 = sphi 0, %s33
      %s55 = sphi 0, %s57
      %s58 = sphi 0, %s55
      %s59 = sphi 0, %s58
      %s75 = sphi 0, %s59
      %s79 = sphi 0, %s79
      %s81 = sphi 0, %s79
      %s82 = sphi 0, %s81
      %s96 = sphi 0, %s82
      %s100 = sphi 0, %s100
      %s102 = sphi 0, %s100
      %s103 = sphi 0, %s102
      %s117 = sphi 0, %s103
      %s121 = sphi 0, %s121
      %s123 = sphi 0, %s121
      %s124 = sphi 0, %s123
      %s138 = sphi 0, %s124
      %s142 = sphi 0, %s142
      %s144 = sphi 0, %s142
      %s145 = sphi 0, %s144
      %s159 = sphi 0, %s145
      %s163 = sphi 0, %s163
      %s165 = sphi 0, %s163
      %s166 = sphi 0, %s165
      %s180 = sphi 0, %s166
      %s186 = sphi 0, %s188
      %s189 = sphi 0, %s186
      %s190 = sphi 0, %s189
      %s206 = sphi 0, %s190
    $region4: #{tpu_custom_call.1} parent=1 // loop_header_branch
      %22 = sbr.rel (%p20) target = $region8
    $region5: #{tpu_custom_call.1} parent=1 // loop_body
      %s24 = ssub.s32 %s19, 1
      %s25 = ssub.s32 %s19, 2
      %s26 = sadd.s32 %s19, 1
      %s27 = ssub.s32 %s19, %s26
      %p28 = scmp.eq.s32.totalorder %s27, 0
      %s30 = sadd.s32 %s29, 1
      %s31 = scalar_select %p28, %s29, %s30
      %p34 = pneg %p28
      %p35 = scmp.eq.s32.totalorder %s19, 1
      %p36 = por %p34, %p35
      %p37 = scmp.ne.s32.totalorder %s29, %s32
      %p38 = scmp.eq.s32.totalorder %s19, 0
      %p39 = por %p37, %p38
      %p40 = scmp.ne.s32.totalorder %s29, %s32
      %p41 = scmp.eq.s32.totalorder %s24, 1
      %p42 = por %p40, %p41
      %p43 = scmp.ne.s32.totalorder %s32, %s33
      %p44 = scmp.eq.s32.totalorder %s24, 0
      %p45 = por %p43, %p44
      %p46 = scmp.ne.s32.totalorder %s32, %s33
      %p47 = scmp.eq.s32.totalorder %s25, 1
      %p48 = por %p46, %p47
      %p50 = scmp.ne.s32.totalorder %s33, %s49
      %p51 = scmp.eq.s32.totalorder %s25, 0
      %p52 = por %p50, %p51
      %s53 = ssub.s32 %s19, %s26
      %p54 = scmp.eq.s32.totalorder %s53, 0
      %s56 = sadd.s32 %s55, 1
      %s57 = scalar_select %p54, %s55, %s56
      %p60 = pneg %p54
      %p61 = scmp.eq.s32.totalorder %s19, 1
      %p62 = por %p60, %p61
      %p63 = scmp.ne.s32.totalorder %s55, %s58
      %p64 = scmp.eq.s32.totalorder %s19, 0
      %p65 = por %p63, %p64
      %p66 = scmp.ne.s32.totalorder %s55, %s58
      %p67 = scmp.eq.s32.totalorder %s24, 1
      %p68 = por %p66, %p67
      %p69 = scmp.ne.s32.totalorder %s58, %s59
      %p70 = scmp.eq.s32.totalorder %s24, 0
      %p71 = por %p69, %p70
      %p72 = scmp.ne.s32.totalorder %s58, %s59
      %p73 = scmp.eq.s32.totalorder %s25, 1
      %p74 = por %p72, %p73
      %p76 = scmp.ne.s32.totalorder %s59, %s75
      %p77 = scmp.eq.s32.totalorder %s25, 0
      %p78 = por %p76, %p77
      %s80 = sadd.s32 %s79, 1
      %p83 = scmp.eq.s32.totalorder %s19, 1
      %p84 = scmp.ne.s32.totalorder %s79, %s81
      %p85 = scmp.eq.s32.totalorder %s19, 0
      %p86 = por %p84, %p85
      %p87 = scmp.ne.s32.totalorder %s79, %s81
      %p88 = scmp.eq.s32.totalorder %s24, 1
      %p89 = por %p87, %p88
      %p90 = scmp.ne.s32.totalorder %s81, %s82
      %p91 = scmp.eq.s32.totalorder %s24, 0
      %p92 = por %p90, %p91
      %p93 = scmp.ne.s32.totalorder %s81, %s82
      %p94 = scmp.eq.s32.totalorder %s25, 1
      %p95 = por %p93, %p94
      %p97 = scmp.ne.s32.totalorder %s82, %s96
      %p98 = scmp.eq.s32.totalorder %s25, 0
      %p99 = por %p97, %p98
      %s101 = sadd.s32 %s100, 1
      %p104 = scmp.eq.s32.totalorder %s19, 1
      %p105 = scmp.ne.s32.totalorder %s100, %s102
      %p106 = scmp.eq.s32.totalorder %s19, 0
      %p107 = por %p105, %p106
      %p108 = scmp.ne.s32.totalorder %s100, %s102
      %p109 = scmp.eq.s32.totalorder %s24, 1
      %p110 = por %p108, %p109
      %p111 = scmp.ne.s32.totalorder %s102, %s103
      %p112 = scmp.eq.s32.totalorder %s24, 0
      %p113 = por %p111, %p112
      %p114 = scmp.ne.s32.totalorder %s102, %s103
      %p115 = scmp.eq.s32.totalorder %s25, 1
      %p116 = por %p114, %p115
      %p118 = scmp.ne.s32.totalorder %s103, %s117
      %p119 = scmp.eq.s32.totalorder %s25, 0
      %p120 = por %p118, %p119
      %s122 = sadd.s32 %s121, 1
      %p125 = scmp.eq.s32.totalorder %s19, 1
      %p126 = scmp.ne.s32.totalorder %s121, %s123
      %p127 = scmp.eq.s32.totalorder %s19, 0
      %p128 = por %p126, %p127
      %p129 = scmp.ne.s32.totalorder %s121, %s123
      %p130 = scmp.eq.s32.totalorder %s24, 1
      %p131 = por %p129, %p130
      %p132 = scmp.ne.s32.totalorder %s123, %s124
      %p133 = scmp.eq.s32.totalorder %s24, 0
      %p134 = por %p132, %p133
      %p135 = scmp.ne.s32.totalorder %s123, %s124
      %p136 = scmp.eq.s32.totalorder %s25, 1
      %p137 = por %p135, %p136
      %p139 = scmp.ne.s32.totalorder %s124, %s138
      %p140 = scmp.eq.s32.totalorder %s25, 0
      %p141 = por %p139, %p140
      %s143 = sadd.s32 %s142, 1
      %p146 = scmp.eq.s32.totalorder %s19, 1
      %p147 = scmp.ne.s32.totalorder %s142, %s144
      %p148 = scmp.eq.s32.totalorder %s19, 0
      %p149 = por %p147, %p148
      %p150 = scmp.ne.s32.totalorder %s142, %s144
      %p151 = scmp.eq.s32.totalorder %s24, 1
      %p152 = por %p150, %p151
      %p153 = scmp.ne.s32.totalorder %s144, %s145
      %p154 = scmp.eq.s32.totalorder %s24, 0
      %p155 = por %p153, %p154
      %p156 = scmp.ne.s32.totalorder %s144, %s145
      %p157 = scmp.eq.s32.totalorder %s25, 1
      %p158 = por %p156, %p157
      %p160 = scmp.ne.s32.totalorder %s145, %s159
      %p161 = scmp.eq.s32.totalorder %s25, 0
      %p162 = por %p160, %p161
      %s164 = sadd.s32 %s163, 1
      %p167 = scmp.eq.s32.totalorder %s19, 1
      %p168 = scmp.ne.s32.totalorder %s163, %s165
      %p169 = scmp.eq.s32.totalorder %s19, 0
      %p170 = por %p168, %p169
      %p171 = scmp.ne.s32.totalorder %s163, %s165
      %p172 = scmp.eq.s32.totalorder %s24, 1
      %p173 = por %p171, %p172
      %p174 = scmp.ne.s32.totalorder %s165, %s166
      %p175 = scmp.eq.s32.totalorder %s24, 0
      %p176 = por %p174, %p175
      %p177 = scmp.ne.s32.totalorder %s165, %s166
      %p178 = scmp.eq.s32.totalorder %s25, 1
      %p179 = por %p177, %p178
      %p181 = scmp.ne.s32.totalorder %s166, %s180
      %p182 = scmp.eq.s32.totalorder %s25, 0
      %p183 = por %p181, %p182
      %s184 = ssub.s32 %s19, %s26
      %p185 = scmp.eq.s32.totalorder %s184, 0
      %s187 = sadd.s32 %s186, 1
      %s188 = scalar_select %p185, %s186, %s187
      %p191 = pneg %p185
      %p192 = scmp.eq.s32.totalorder %s19, 1
      %p193 = por %p191, %p192
      %p194 = scmp.ne.s32.totalorder %s186, %s189
      %p195 = scmp.eq.s32.totalorder %s19, 0
      %p196 = por %p194, %p195
      %p197 = scmp.ne.s32.totalorder %s186, %s189
      %p198 = scmp.eq.s32.totalorder %s24, 1
      %p199 = por %p197, %p198
      %p200 = scmp.ne.s32.totalorder %s189, %s190
      %p201 = scmp.eq.s32.totalorder %s24, 0
      %p202 = por %p200, %p201
      %p203 = scmp.ne.s32.totalorder %s189, %s190
      %p204 = scmp.eq.s32.totalorder %s25, 1
      %p205 = por %p203, %p204
      %p207 = scmp.ne.s32.totalorder %s190, %s206
      %p208 = scmp.eq.s32.totalorder %s25, 0
      %p209 = por %p207, %p208
      %p210 = scmp.le.s32.totalorder 1, %s19
      %p211 = scmp.lt.s32.totalorder %s19, 3
      %p212 = pnand %p210, %p211
      %p213 = pneg %p212
      // Predicated region
      $region9: #{tpu_custom_call.1} parent=5 // pred_check
        _
      $region10: #{tpu_custom_call.1} parent=5 // pred_check_branch
        %215 = sbr.rel (%p212) target = $region12
      $region11: #{tpu_custom_call.1} parent=5 // pred_region
        %s216 = ssub.s32 %s19, 1
        // Predicated region
        $region13: #{tpu_custom_call.1} parent=11 // pred_check
          %p217 = pneg %p92
        $region14: #{tpu_custom_call.1} parent=11 // pred_check_branch
          %219 = sbr.rel (%p217) target = $region16
        $region15: #{tpu_custom_call.1} parent=11 // pred_region
          _
        $region16: #{tpu_custom_call.1} parent=11 // pred_fallthru
          _
        // Predicated region
        $region17: #{tpu_custom_call.1} parent=11 // pred_check
          %p220 = pneg %p113
        $region18: #{tpu_custom_call.1} parent=11 // pred_check_branch
          %222 = sbr.rel (%p220) target = $region20
        $region19: #{tpu_custom_call.1} parent=11 // pred_region
          _
        $region20: #{tpu_custom_call.1} parent=11 // pred_fallthru
          _
        // Predicated region
        $region21: #{tpu_custom_call.1} parent=11 // pred_check
          %p223 = pneg %p134
        $region22: #{tpu_custom_call.1} parent=11 // pred_check_branch
          %225 = sbr.rel (%p223) target = $region24
        $region23: #{tpu_custom_call.1} parent=11 // pred_region
          _
        $region24: #{tpu_custom_call.1} parent=11 // pred_fallthru
          _
        // Predicated region
        $region25: #{tpu_custom_call.1} parent=11 // pred_check
          %p226 = pneg %p155
        $region26: #{tpu_custom_call.1} parent=11 // pred_check_branch
          %228 = sbr.rel (%p226) target = $region28
        $region27: #{tpu_custom_call.1} parent=11 // pred_region
          _
        $region28: #{tpu_custom_call.1} parent=11 // pred_fallthru
          _
        // Predicated region
        $region29: #{tpu_custom_call.1} parent=11 // pred_check
          %p229 = pneg %p176
        $region30: #{tpu_custom_call.1} parent=11 // pred_check_branch
          %231 = sbr.rel (%p229) target = $region32
        $region31: #{tpu_custom_call.1} parent=11 // pred_region
          _
        $region32: #{tpu_custom_call.1} parent=11 // pred_fallthru
          _
      $region12: #{tpu_custom_call.1} parent=5 // pred_fallthru
        _
      %p232 = scmp.lt.s32.totalorder %s19, 2
      // Predicated region
      $region33: #{tpu_custom_call.1} parent=5 // pred_check
        %p233 = pneg %p232
      $region34: #{tpu_custom_call.1} parent=5 // pred_check_branch
        %235 = sbr.rel (%p233) target = $region36
      $region35: #{tpu_custom_call.1} parent=5 // pred_region
        // Predicated region
        $region37: #{tpu_custom_call.1} parent=35 // pred_check
          %p236 = pneg %p39
        $region38: #{tpu_custom_call.1} parent=35 // pred_check_branch
          %238 = sbr.rel (%p236) target = $region40
        $region39: #{tpu_custom_call.1} parent=35 // pred_region
          %s239 = sand.u32 %s29, 1
          %s240 = scalar_lea.sflag [#allocation3], %s239
          %s241 = sand.u32 %s29, 1
          %s242 = smul.addr %s241, 16
          %s243 = scalar_lea.vmem [#allocation2], %s242
          %245 = vsyncadd %s240, 0
          %s246 = smul.addr %s19, 2
          %s247 = smul.addr %s246, 8
          %s248 = scalar_lea.hbm %s0, %s247
          %s250 = sshll.u32 %s248, 4
          %s251 = int_to_ptr.hbm [resolvable:$true] %s250
          %s252 = sshll.u32 %s243, 4
          %s253 = int_to_ptr.vmem [resolvable:$true] %s252
          %255 = dma.hbm_to_vmem [thread:$0]  %s251, 256, %s253, %s240
        $region40: #{tpu_custom_call.1} parent=35 // pred_fallthru
          _
        // Predicated region
        $region41: #{tpu_custom_call.1} parent=35 // pred_check
          %p256 = pneg %p65
        $region42: #{tpu_custom_call.1} parent=35 // pred_check_branch
          %258 = sbr.rel (%p256) target = $region44
        $region43: #{tpu_custom_call.1} parent=35 // pred_region
          %p259 = scmp.lt.s32.totalorder %s19, 1
          %s260 = scalar_select %p259, %s19, 1
          %s261 = smul.addr %s260, 2
          %s262 = smul.addr %s261, 8
          %s263 = scalar_lea.vmem %s1, %s262
        $region44: #{tpu_custom_call.1} parent=35 // pred_fallthru
          _
      $region36: #{tpu_custom_call.1} parent=5 // pred_fallthru
        _
      %p264 = scmp.le.s32.totalorder 1, %s19
      %p265 = scmp.lt.s32.totalorder %s19, 3
      %p266 = pnand %p264, %p265
      %p267 = pneg %p266
      // Predicated region
      $region45: #{tpu_custom_call.1} parent=5 // pred_check
        _
      $region46: #{tpu_custom_call.1} parent=5 // pred_check_branch
        %269 = sbr.rel (%p266) target = $region48
      $region47: #{tpu_custom_call.1} parent=5 // pred_region
        %s270 = ssub.s32 %s19, 1
        %s271 = sand.u32 %s32, 1
        %s272 = scalar_lea.sflag [#allocation3], %s271
        %s273 = sand.u32 %s32, 1
        %s274 = smul.addr %s273, 16
        %s275 = scalar_lea.vmem [#allocation2], %s274
        // Predicated region
        $region49: #{tpu_custom_call.1} parent=47 // pred_check
          %p276 = pneg %p45
        $region50: #{tpu_custom_call.1} parent=47 // pred_check_branch
          %278 = sbr.rel (%p276) target = $region52
        $region51: #{tpu_custom_call.1} parent=47 // pred_region
          %280 = dma.done %s272, 256
        $region52: #{tpu_custom_call.1} parent=47 // pred_fallthru
          _
        %s281 = sand.u32 %s32, 1
        %s282 = scalar_lea.sflag [#allocation3], %s281
        %s283 = sand.u32 %s32, 1
        %s284 = smul.addr %s283, 16
        %s285 = scalar_lea.vmem [#allocation2], %s284
        %p286 = pneg %p45
        %p287 = pneg %p42
        %p288 = scmp.lt.s32.totalorder %s24, 1
        %s289 = scalar_select %p288, %s24, 1
        %s290 = smul.addr %s289, 2
        %s291 = smul.addr %s290, 8
        %s292 = scalar_lea.vmem %s1, %s291
        %p293 = pneg %p71
        %p294 = pneg %p68
        %p295 = pneg %p92
        %p296 = pneg %p89
        %p297 = pneg %p113
        %p298 = pneg %p110
        %p299 = pneg %p134
        %p300 = pneg %p131
        %p301 = pneg %p155
        %p302 = pneg %p152
        %p303 = pneg %p176
        %p304 = pneg %p173
        %p305 = pneg %p202
        %p306 = pneg %p199
        %s307 = sand.u32 %s189, 1
        %s308 = scalar_lea.sflag [#allocation4], %s307
        %s309 = sand.u32 %s189, 1
        %s310 = smul.addr %s309, 16
        %s311 = scalar_lea.vmem [#allocation5], %s310
        %p312 = scmp.lt.s32.totalorder %s24, 1
        %s313 = scalar_select %p312, %s24, 1
        %s314 = smul.addr %s313, 2
        %s315 = smul.addr %s314, 8
        %s316 = scalar_lea.vmem %s1, %s315
        %v317 = vld [vmem:[%s275] sm:$0xff]
        %v318 = vld [vmem:[%s275 + $0x8] sm:$0xff]
        %v319 = vld [vmem:[%s316] sm:$0xff]
        %v320 = vld [vmem:[%s316 + $0x8] sm:$0xff]
        %v321 = vadd.f32 %v317, %v318
        %322 = vadd.xlane.f32.xlu0 %v321
        %v323 = vpop.xlane.xlu0 %322
        %v324 = vmul.f32 %v323, 0.00390625
        %v325 = vadd.f32 %v319, %v320
        %326 = vadd.xlane.f32.xlu0 %v325
        %v327 = vpop.xlane.xlu0 %326
        %v328 = vmul.f32 %v327, 0.00390625
        %v329 = vld [vmem:[%s2] sm:$0xff]
        %v330 = vld [vmem:[%s3] sm:$0xff]
        %v332 = vlaneseq
        %v333 = vand.u32 %v332, 127
        %v334 = vperm.slane %v328, %v333
        %vm335 = vcmask 64512
        %v336 = vsel %vm335, %v334, 0
        %338 = vmatpush.msra.mxu0 0.0
        %339 = vmatpush.msra.mxu0 0.0
        %340 = vmatpush.msra.mxu0 0.0
        %341 = vmatpush.msra.mxu0 0.0
        %342 = vmatpush.msra.mxu0 0.0
        %343 = vmatpush.msra.mxu0 0.0
        %344 = vmatpush.msra.mxu0 0.0
        %345 = vmatpush.msra.mxu0 0.0
        %346 = vmatpush.msra.mxu0 0.0
        %347 = vmatpush.msra.mxu0 0.0
        %348 = vmatpush.msra.mxu0 0.0
        %349 = vmatpush.msra.mxu0 0.0
        %350 = vmatpush.msra.mxu0 0.0
        %351 = vmatpush.msra.mxu0 0.0
        %352 = vmatpush.msra.mxu0 0.0
        %353 = vmatpush.msra.mxu0 %v330
        %354 = vmatmul.f32.gmra.mxu0 %v336
        %v355 = vpop.f32.mrf.mxu0
        %v356 = vadd.f32 0.0, %v355
        %357 = vdwg.mxu0
        %v359 = vperm.slane %v324, %v333
        %v360 = vsel %vm335, %v359, 0
        %362 = vmatpush.msra.mxu0 0.0
        %363 = vmatpush.msra.mxu0 0.0
        %364 = vmatpush.msra.mxu0 0.0
        %365 = vmatpush.msra.mxu0 0.0
        %366 = vmatpush.msra.mxu0 0.0
        %367 = vmatpush.msra.mxu0 0.0
        %368 = vmatpush.msra.mxu0 0.0
        %369 = vmatpush.msra.mxu0 0.0
        %370 = vmatpush.msra.mxu0 0.0
        %371 = vmatpush.msra.mxu0 0.0
        %372 = vmatpush.msra.mxu0 0.0
        %373 = vmatpush.msra.mxu0 0.0
        %374 = vmatpush.msra.mxu0 0.0
        %375 = vmatpush.msra.mxu0 0.0
        %376 = vmatpush.msra.mxu0 0.0
        %377 = vmatpush.msra.mxu0 %v329
        %378 = vmatmul.f32.gmra.mxu0 %v360
        %v379 = vpop.f32.mrf.mxu0
        %v380 = vadd.f32 %v356, %v379
        %381 = vdwg.mxu0
        %v382 = vld [vmem:[%s4] sm:$0x1]
        %v383 = vadd.f32 %v380, %v382
        %v384 = vmax.f32 %v383, 0.0
        %v385 = vld [vmem:[%s5] sm:$0xff]
        %v386 = vld [vmem:[%s6] sm:$0x1]
        %v388 = vsel %vm335, %v384, 0
        %390 = vmatpush.msra.mxu0 0.0
        %391 = vmatpush.msra.mxu0 0.0
        %392 = vmatpush.msra.mxu0 0.0
        %393 = vmatpush.msra.mxu0 0.0
        %394 = vmatpush.msra.mxu0 0.0
        %395 = vmatpush.msra.mxu0 0.0
        %396 = vmatpush.msra.mxu0 0.0
        %397 = vmatpush.msra.mxu0 0.0
        %398 = vmatpush.msra.mxu0 0.0
        %399 = vmatpush.msra.mxu0 0.0
        %400 = vmatpush.msra.mxu0 0.0
        %401 = vmatpush.msra.mxu0 0.0
        %402 = vmatpush.msra.mxu0 0.0
        %403 = vmatpush.msra.mxu0 0.0
        %404 = vmatpush.msra.mxu0 0.0
        %405 = vmatpush.msra.mxu0 %v385
        %406 = vmatmul.f32.gmra.mxu0 %v388
        %v407 = vpop.f32.mrf.mxu0
        %v408 = vadd.f32 %v386, %v407
        %409 = vdwg.mxu0
        %v410 = vxor.u32 %v408, 2147483648
        %v411 = vmul.f32 %v410, 1.442695
        %v412 = vpow.pop %v411
        %v413 = vadd.f32 %v412, 1.0
        %v414 = vrcp.pop %v413
        %v415 = vmul.f32 %v413, %v414
        %v416 = vsub.f32 1.0, %v415
        %v417 = vmul.f32 %v414, %v416
        %v418 = vadd.f32 %v414, %v417
        %vm419 = vweird.f32 %v413
        %vm420 = vweird.f32 %v414
        %vm421 = vmor %vm419, %vm420
        %v422 = vsel %vm421, %v414, %v418
        %v423 = vand.u32 2147483647, %v413
        %vm424 = vcmp.eq.f32.partialorder %v423, 8.507059e+37
        %v425 = vand.u32 %v413, 2147483648
        %v426 = vor.u32 1.1754944e-38, %v425
        %v427 = vsel %vm424, %v426, %v422
        %v428 = vmul.f32 1.0, %v427
        %v429 = vperm.slane %v428, 0
        %v430 = vlaneseq
        %v431 = vshrl.u32 %v430, 7
        %433 = vset.pattern.permute.xlu0 %v431
        %434 = vperm.xlu0 %433, %v429
        %v435 = vpop.permute.xlu0 %434
        %v436 = vmul.f32 %v435, %v319
        %v437 = vmul.f32 %v435, %v320
        %v438 = vadd.f32 %v436, %v317
        %v439 = vadd.f32 %v437, %v318
        %440 = vst [vmem:[%s311] sm:$0xff] %v438
        %441 = vst [vmem:[%s311 + $0x8] sm:$0xff] %v439
        %s442 = sand.u32 %s189, 1
        %s443 = scalar_lea.sflag [#allocation4], %s442
        %s444 = sand.u32 %s189, 1
        %s445 = smul.addr %s444, 16
        %s446 = scalar_lea.vmem [#allocation5], %s445
        // Predicated region
        $region53: #{tpu_custom_call.1} parent=47 // pred_check
          %p447 = pneg %p199
        $region54: #{tpu_custom_call.1} parent=47 // pred_check_branch
          %449 = sbr.rel (%p447) target = $region56
        $region55: #{tpu_custom_call.1} parent=47 // pred_region
          %451 = vsyncadd %s443, 0
          %s452 = smul.addr %s24, 2
          %s453 = smul.addr %s452, 8
          %s454 = scalar_lea.hbm %s7, %s453
          %s456 = sshll.u32 %s446, 4
          %s457 = int_to_ptr.vmem [resolvable:$true] %s456
          %s458 = sshll.u32 %s454, 4
          %s459 = int_to_ptr.hbm [resolvable:$true] %s458
          %461 = dma.vmem_to_hbm [thread:$0]  %s457, 256, %s459, %s443
        $region56: #{tpu_custom_call.1} parent=47 // pred_fallthru
          _
      $region48: #{tpu_custom_call.1} parent=5 // pred_fallthru
        _
      %p462 = scmp.le.s32.totalorder 2, %s19
      // Predicated region
      $region57: #{tpu_custom_call.1} parent=5 // pred_check
        %p463 = pneg %p462
      $region58: #{tpu_custom_call.1} parent=5 // pred_check_branch
        %465 = sbr.rel (%p463) target = $region60
      $region59: #{tpu_custom_call.1} parent=5 // pred_region
        %s466 = ssub.s32 %s19, 2
        // Predicated region
        $region61: #{tpu_custom_call.1} parent=59 // pred_check
          %p467 = pneg %p205
        $region62: #{tpu_custom_call.1} parent=59 // pred_check_branch
          %469 = sbr.rel (%p467) target = $region64
        $region63: #{tpu_custom_call.1} parent=59 // pred_region
          %s470 = sand.u32 %s190, 1
          %s471 = scalar_lea.sflag [#allocation4], %s470
          %s472 = sand.u32 %s190, 1
          %s473 = smul.addr %s472, 16
          %s474 = scalar_lea.vmem [#allocation5], %s473
          %476 = dma.done %s471, 256
        $region64: #{tpu_custom_call.1} parent=59 // pred_fallthru
          _
      $region60: #{tpu_custom_call.1} parent=5 // pred_fallthru
        _
    $region6: #{tpu_custom_call.1} parent=1 // loop_footer
      %s23 = sadd.s32 1, %s19
    $region7: #{tpu_custom_call.1} parent=1 // loop_footer_branch
      %18 = sbr.rel target = $region3
    $region8: #{tpu_custom_call.1} parent=1 // loop_exit
      _
    %477 = vsyncpa [#allocation3], 1
    %s478 = scalar_lea.sflag [#allocation3], 1
    %479 = vsyncpa %s478, 1
    %480 = vsyncpa [#allocation4], 1
    %s481 = scalar_lea.sflag [#allocation4], 1
    %482 = vsyncpa %s481, 1

</llo_original>
